<compile_context>
chip_gen: v7x
topology: tpu7x:2x2x1
jax: 0.10.0
libtpu: 0.0.40
codegen_flags: <defaults>
</compile_context>

<pallas_src>
import functools

import jax
import jax.numpy as jnp
from jax.experimental import pallas as pl
from jax.experimental.pallas import tpu as pltpu


def _conv_bn_lrelu_kernel(p_ref, w_ref, b_ref, g_ref, bt_ref, o_ref, *, eps, slope):
    # p_ref : (Kp, M)  bf16   im2col'd input, channel-major rows (tap*Cin + ci), padded to Kp
    # w_ref : (Cout, Kp) bf16 conv weights, (co) x (kd,kh,kw,ci), padded to Kp
    # b_ref : (Cout, 1) f32   conv bias
    # g_ref : (Cout, 1) f32   BN gamma
    # bt_ref: (Cout, 1) f32   BN beta
    # o_ref : (Cout, M) f32   output (channel-major, lane-dense)
    y = jnp.dot(w_ref[...], p_ref[...], preferred_element_type=jnp.float32)  # (Cout, M) f32
    y = y + b_ref[...]                                                       # broadcast (Cout,1)

    # BatchNorm3d (training mode): biased batch stats over (N,D,H,W) == lane axis, one pass.
    m = y.shape[1]
    inv_m = jnp.float32(1.0 / m)
    s1 = jnp.sum(y, axis=1, keepdims=True)            # (Cout, 1)
    s2 = jnp.sum(y * y, axis=1, keepdims=True)        # (Cout, 1)
    mean = s1 * inv_m
    var = jnp.maximum(s2 * inv_m - mean * mean, 0.0)  # guard E[y^2]-mean^2 cancellation
    scale = jax.lax.rsqrt(var + eps) * g_ref[...]     # (Cout, 1)
    z = (y - mean) * scale + bt_ref[...]

    # LeakyReLU (negative_slope = 0.01)
    o_ref[...] = jnp.where(z > 0, z, slope * z)


def conv_bn_relu(x_ncdhw, weight, bias, gamma, beta, *, eps=1e-5, slope=0.01):
    """x_ncdhw: (N, Cin, D, H, W); weight: (Cout, Cin, 3, 3, 3); returns (N, Cout, D, H, W)."""
    N, Cin, D, H, W = x_ncdhw.shape
    Cout = weight.shape[0]
    M = N * D * H * W
    K = 27 * Cin
    Kp = ((K + 15) // 16) * 16  # pad contraction depth to the bf16 sublane granule only

    # ---- XLA-side glue: channel-major im2col, no full-tensor relayout transposes ----
    x_bf = x_ncdhw.astype(jnp.bfloat16)
    x_pad = jnp.pad(x_bf, ((0, 0), (0, 0), (1, 1), (1, 1), (1, 1)))        # NCDHW pad
    x_cf = jnp.transpose(x_pad, (1, 0, 2, 3, 4))                           # (Cin, N, D+2, H+2, W+2)

    rows = []
    for kd in range(3):
        for kh in range(3):
            for kw in range(3):
                win = x_cf[:, :, kd:kd + D, kh:kh + H, kw:kw + W]          # (Cin, N, D, H, W)
                rows.append(win.reshape(Cin, M))
    patches_t = jnp.concatenate(rows, axis=0)                              # (27*Cin, M)
    patches_t = jnp.pad(patches_t, ((0, Kp - K), (0, 0)))                  # (Kp, M), bf16

    # weight (Cout, Cin, kd, kh, kw) -> (Cout, kd, kh, kw, Cin) -> (Cout, 27*Cin) -> pad K
    w_lhs = jnp.transpose(weight, (0, 2, 3, 4, 1)).reshape(Cout, K).astype(jnp.bfloat16)
    w_lhs = jnp.pad(w_lhs, ((0, 0), (0, Kp - K)))                          # (Cout, Kp), bf16

    b2d = bias.reshape(Cout, 1).astype(jnp.float32)
    g2d = gamma.reshape(Cout, 1).astype(jnp.float32)
    bt2d = beta.reshape(Cout, 1).astype(jnp.float32)

    kernel = functools.partial(_conv_bn_lrelu_kernel, eps=eps, slope=slope)

    cost = pl.CostEstimate(
        flops=2 * M * Kp * Cout + 10 * M * Cout,
        transcendentals=Cout,
        bytes_accessed=(Kp * M * 2 + Cout * Kp * 2 + 3 * Cout * 4 + Cout * M * 4),
    )

    out_cm = pl.pallas_call(
        kernel,
        out_shape=jax.ShapeDtypeStruct((Cout, M), jnp.float32),
        grid=(1,),
        in_specs=[
            pl.BlockSpec((Kp, M), lambda i: (0, 0)),
            pl.BlockSpec((Cout, Kp), lambda i: (0, 0)),
            pl.BlockSpec((Cout, 1), lambda i: (0, 0)),
            pl.BlockSpec((Cout, 1), lambda i: (0, 0)),
            pl.BlockSpec((Cout, 1), lambda i: (0, 0)),
        ],
        out_specs=pl.BlockSpec((Cout, M), lambda i: (0, 0)),
        compiler_params=pltpu.CompilerParams(
            dimension_semantics=("arbitrary",)),
        cost_estimate=cost,
    )(patches_t, w_lhs, b2d, g2d, bt2d)

    # (Cout, M) -> (Cout, N, D, H, W) -> (N, Cout, D, H, W)   (leading-axis swap only, XLA-side)
    return jnp.transpose(out_cm.reshape(Cout, N, D, H, W), (1, 0, 2, 3, 4))


def _reference(x_ncdhw, weight, bias, gamma, beta, eps=1e-5, slope=0.01):
    """Plain-JAX f32 reference matching PyTorch Conv3d + BatchNorm3d(train) + LeakyReLU."""
    x_ndhwc = jnp.transpose(x_ncdhw, (0, 2, 3, 4, 1)).astype(jnp.float32)
    w_dhwio = jnp.transpose(weight, (2, 3, 4, 1, 0)).astype(jnp.float32)
    y = jax.lax.conv_general_dilated(
        x_ndhwc, w_dhwio, window_strides=(1, 1, 1),
        padding=((1, 1), (1, 1), (1, 1)),
        dimension_numbers=("NDHWC", "DHWIO", "NDHWC"))
    y = y + bias
    mean = y.mean(axis=(0, 1, 2, 3))
    var = ((y - mean) ** 2).mean(axis=(0, 1, 2, 3))
    z = (y - mean) / jnp.sqrt(var + eps) * gamma + beta
    z = jnp.where(z > 0, z, slope * z)
    return jnp.transpose(z, (0, 4, 1, 2, 3))


if __name__ == "__main__":
    # Conv_Bn_Relu(indim=4, outdim=8) on a 2 x 4 x 8^3 volume (NCDHW).
    N, Cin, Cout, D, H, W = 2, 4, 8, 8, 8, 8

    key = jax.random.PRNGKey(0)
    kx, kw, kb = jax.random.split(key, 3)

    x = jax.random.normal(kx, (N, Cin, D, H, W), dtype=jnp.float32)

    # PyTorch-style uniform init bounds; BN affine = identity init.
    fan_in = Cin * 3 * 3 * 3
    bound = 1.0 / (fan_in ** 0.5)
    weight = jax.random.uniform(kw, (Cout, Cin, 3, 3, 3), jnp.float32, -bound, bound)
    bias = jax.random.uniform(kb, (Cout,), jnp.float32, -bound, bound)
    gamma = jnp.ones((Cout,), jnp.float32)
    beta = jnp.zeros((Cout,), jnp.float32)

    out = conv_bn_relu(x, weight, bias, gamma, beta)
    out = jax.block_until_ready(out)

    ref = _reference(x, weight, bias, gamma, beta)
    max_err = float(jnp.max(jnp.abs(out - ref)))
    assert out.shape == (N, Cout, D, H, W), out.shape
    # bf16 matmul operands (f32 accumulation/epilogue) vs. pure-f32 reference: ~1e-2 scale error
    # after BN normalization; 5e-2 gives comfortable margin.
    assert max_err < 5e-2, f"max abs error {max_err}"

    print("KERNEL_OK")
</pallas_src>

<mosaic_0001>
module attributes {stable_mosaic.version = 11 : i64} {
  func.func @_conv_bn_lrelu_kernel(%arg0: i32, %arg1: memref<112x1024xbf16, #tpu.memory_space<vmem>>, %arg2: memref<8x112xbf16, #tpu.memory_space<vmem>>, %arg3: memref<8x1xf32, #tpu.memory_space<vmem>>, %arg4: memref<8x1xf32, #tpu.memory_space<vmem>>, %arg5: memref<8x1xf32, #tpu.memory_space<vmem>>, %arg6: memref<8x1024xf32, #tpu.memory_space<vmem>>) attributes {dimension_semantics = [#tpu.dimension_semantics<arbitrary>], iteration_bounds = array<i64: 1>, scalar_prefetch = 0 : i64, scratch_operands = 0 : i64, tpu.core_type = #tpu.core_type<tc>, window_params = [{pipeline_mode = #tpu.pipeline_mode<synchronous>, transform_indices = @transform_0, window_bounds = array<i64: 112, 1024>}, {pipeline_mode = #tpu.pipeline_mode<synchronous>, transform_indices = @transform_1, window_bounds = array<i64: 8, 112>}, {pipeline_mode = #tpu.pipeline_mode<synchronous>, transform_indices = @transform_2, window_bounds = array<i64: 8, 1>}, {pipeline_mode = #tpu.pipeline_mode<synchronous>, transform_indices = @transform_3, window_bounds = array<i64: 8, 1>}, {pipeline_mode = #tpu.pipeline_mode<synchronous>, transform_indices = @transform_4, window_bounds = array<i64: 8, 1>}, {pipeline_mode = #tpu.pipeline_mode<synchronous>, transform_indices = @transform_5, window_bounds = array<i64: 8, 1024>}]} {
    %c0 = arith.constant 0 : index
    %c0_0 = arith.constant 0 : index
    %0 = vector.load %arg2[%c0, %c0_0] : memref<8x112xbf16, #tpu.memory_space<vmem>>, vector<8x112xbf16>
    %c0_1 = arith.constant 0 : index
    %c0_2 = arith.constant 0 : index
    %1 = vector.load %arg1[%c0_1, %c0_2] : memref<112x1024xbf16, #tpu.memory_space<vmem>>, vector<112x1024xbf16>
    %cst = arith.constant dense<0.000000e+00> : vector<8x1024xf32>
    %2 = tpu.matmul %0, %1, %cst {dimension_numbers = #tpu.dot_dimension_numbers<[1], [0], [0], [1], [0, 0, 1, 1], [], []>} : vector<8x112xbf16>, vector<112x1024xbf16>, vector<8x1024xf32> -> vector<8x1024xf32>
    %c0_3 = arith.constant 0 : index
    %c0_4 = arith.constant 0 : index
    %3 = vector.load %arg3[%c0_3, %c0_4] : memref<8x1xf32, #tpu.memory_space<vmem>>, vector<8x1xf32>
    %4 = vector.broadcast %3 : vector<8x1xf32> to vector<8x1024xf32>
    %5 = arith.addf %2, %4 : vector<8x1024xf32>
    %cst_5 = arith.constant dense<0.000000e+00> : vector<8xf32>
    %6 = vector.multi_reduction <add>, %5, %cst_5 [1] : vector<8x1024xf32> to vector<8xf32>
    %7 = vector.shape_cast %6 : vector<8xf32> to vector<8x1xf32>
    %8 = arith.mulf %5, %5 : vector<8x1024xf32>
    %cst_6 = arith.constant dense<0.000000e+00> : vector<8xf32>
    %9 = vector.multi_reduction <add>, %8, %cst_6 [1] : vector<8x1024xf32> to vector<8xf32>
    %10 = vector.shape_cast %9 : vector<8xf32> to vector<8x1xf32>
    %cst_7 = arith.constant 9.765625E-4 : f32
    %11 = vector.broadcast %cst_7 : f32 to vector<8x1xf32>
    %12 = arith.mulf %7, %11 : vector<8x1xf32>
    %cst_8 = arith.constant 9.765625E-4 : f32
    %13 = vector.broadcast %cst_8 : f32 to vector<8x1xf32>
    %14 = arith.mulf %10, %13 : vector<8x1xf32>
    %15 = arith.mulf %12, %12 : vector<8x1xf32>
    %16 = arith.subf %14, %15 : vector<8x1xf32>
    %cst_9 = arith.constant 0.000000e+00 : f32
    %17 = vector.broadcast %cst_9 : f32 to vector<8x1xf32>
    %18 = arith.maximumf %16, %17 : vector<8x1xf32>
    %cst_10 = arith.constant 9.99999974E-6 : f32
    %19 = vector.broadcast %cst_10 : f32 to vector<8x1xf32>
    %20 = arith.addf %18, %19 : vector<8x1xf32>
    %21 = math.rsqrt %20 : vector<8x1xf32>
    %c0_11 = arith.constant 0 : index
    %c0_12 = arith.constant 0 : index
    %22 = vector.load %arg4[%c0_11, %c0_12] : memref<8x1xf32, #tpu.memory_space<vmem>>, vector<8x1xf32>
    %23 = arith.mulf %21, %22 : vector<8x1xf32>
    %24 = vector.broadcast %12 : vector<8x1xf32> to vector<8x1024xf32>
    %25 = arith.subf %5, %24 : vector<8x1024xf32>
    %26 = vector.broadcast %23 : vector<8x1xf32> to vector<8x1024xf32>
    %27 = arith.mulf %25, %26 : vector<8x1024xf32>
    %c0_13 = arith.constant 0 : index
    %c0_14 = arith.constant 0 : index
    %28 = vector.load %arg5[%c0_13, %c0_14] : memref<8x1xf32, #tpu.memory_space<vmem>>, vector<8x1xf32>
    %29 = vector.broadcast %28 : vector<8x1xf32> to vector<8x1024xf32>
    %30 = arith.addf %27, %29 : vector<8x1024xf32>
    %cst_15 = arith.constant 0.000000e+00 : f32
    %31 = vector.broadcast %cst_15 : f32 to vector<8x1024xf32>
    %32 = arith.cmpf ogt, %30, %31 : vector<8x1024xf32>
    %cst_16 = arith.constant 0.00999999977 : f32
    %33 = vector.broadcast %cst_16 : f32 to vector<8x1024xf32>
    %34 = arith.mulf %33, %30 : vector<8x1024xf32>
    %35 = arith.select %32, %30, %34 : vector<8x1024xi1>, vector<8x1024xf32>
    %c0_17 = arith.constant 0 : index
    %c0_18 = arith.constant 0 : index
    %36 = vector.load %arg6[%c0_17, %c0_18] : memref<8x1024xf32, #tpu.memory_space<vmem>>, vector<8x1024xf32>
    tpu.vector_store %arg6[%c0_17, %c0_18], %35 {strides = array<i32>} : memref<8x1024xf32, #tpu.memory_space<vmem>>, vector<8x1024xf32>,
    return
  }
  func.func @transform_0(%arg0: i32) -> (i32, i32) {
    %c0_i32 = arith.constant 0 : i32
    %c0_i32_0 = arith.constant 0 : i32
    %c0_i32_1 = arith.constant 0 : i32
    return %c0_i32, %c0_i32_0 : i32, i32
  }
  func.func @transform_1(%arg0: i32) -> (i32, i32) {
    %c0_i32 = arith.constant 0 : i32
    %c0_i32_0 = arith.constant 0 : i32
    %c0_i32_1 = arith.constant 0 : i32
    return %c0_i32, %c0_i32_0 : i32, i32
  }
  func.func @transform_2(%arg0: i32) -> (i32, i32) {
    %c0_i32 = arith.constant 0 : i32
    %c0_i32_0 = arith.constant 0 : i32
    %c0_i32_1 = arith.constant 0 : i32
    return %c0_i32, %c0_i32_0 : i32, i32
  }
  func.func @transform_3(%arg0: i32) -> (i32, i32) {
    %c0_i32 = arith.constant 0 : i32
    %c0_i32_0 = arith.constant 0 : i32
    %c0_i32_1 = arith.constant 0 : i32
    return %c0_i32, %c0_i32_0 : i32, i32
  }
  func.func @transform_4(%arg0: i32) -> (i32, i32) {
    %c0_i32 = arith.constant 0 : i32
    %c0_i32_0 = arith.constant 0 : i32
    %c0_i32_1 = arith.constant 0 : i32
    return %c0_i32, %c0_i32_0 : i32, i32
  }
  func.func @transform_5(%arg0: i32) -> (i32, i32) {
    %c0_i32 = arith.constant 0 : i32
    %c0_i32_0 = arith.constant 0 : i32
    %c0_i32_1 = arith.constant 0 : i32
    return %c0_i32, %c0_i32_0 : i32, i32
  }
}

</mosaic_0001>

<llo_original>
// kernel: tpu_custom_call.1
$region0: #{tpu_custom_call.1}
  #allocation0 [shape = 'u32[]', space=smem, size = 0x4, offset = 0x4, fixed_abs, tag = 'smem constant byte address 0x4 - core index']
  #allocation1 [shape = 'u32[144,128]{1,0:T(1,128)}', space=vmem, size = 0x12000, scoped, tag = 'internal scratch']
  %s0 = inlined_call_operand.hbm [shape: bf16[112,1024], index: 0, kind: input, shape index: {}]
  %s1 = inlined_call_operand.vmem [shape: bf16[8,112], index: 1, kind: input, shape index: {}]
  %s2 = inlined_call_operand.vmem [shape: f32[8,1], index: 2, kind: input, shape index: {}]
  %s3 = inlined_call_operand.vmem [shape: f32[8,1], index: 3, kind: input, shape index: {}]
  %s4 = inlined_call_operand.vmem [shape: f32[8,1], index: 4, kind: input, shape index: {}]
  %s5 = inlined_call_operand.hbm [shape: f32[8,1024], index: 5, kind: output, shape index: {}]
  %s6 = sld [smem:[#allocation0]]
  $region34: #{tpu_custom_call.1} parent=0
    _
  %s8 = ssub.s32 1, %s6
  %s9 = scalar_select 0, %s8, %s6
  $region1: #{tpu_custom_call.1} parent=0
    #allocation2 [shape = 'u8[229376]{0}', space=vmem, size = 0x38000, scoped, tag = 'input window, operand 0, single buffered']
    #allocation3 [shape = 's32[1]{0}', space=sflag, size = 0x4, scoped, tag = 'scoped memory for tpu_custom_call.1']
    #allocation4 [shape = 's32[1]{0}', space=sflag, size = 0x4, scoped, tag = 'scoped memory for tpu_custom_call.1']
    #allocation5 [shape = 'u8[32768]{0}', space=vmem, size = 0x8000, scoped, tag = 'output window, operand 0, single buffered']
    %10 = vsyncpa [#allocation3], 0
    %11 = vsyncpa [#allocation4], 0
    // Predicated region
    $region2: #{tpu_custom_call.1} parent=1 // pred_check
      _
    $region3: #{tpu_custom_call.1} parent=1 // pred_check_branch
      %13 = sbr.rel (0) target = $region5
    $region4: #{tpu_custom_call.1} parent=1 // pred_region
      %s15 = ssub.s32 7168, 7168
      %16 = vsyncadd [#allocation3], %s15
      %s17 = sshll.u32 [#allocation2], 4
      %s18 = int_to_ptr.vmem [resolvable:$true] %s17
      %23 = dma.hbm_to_vmem [thread:$0]  %s0, 7168, %s18, [#allocation3], 512, 512, 32
    $region5: #{tpu_custom_call.1} parent=1 // pred_fallthru
      _
    // Predicated region
    $region6: #{tpu_custom_call.1} parent=1 // pred_check
      _
    $region7: #{tpu_custom_call.1} parent=1 // pred_check_branch
      %25 = sbr.rel (0) target = $region9
    $region8: #{tpu_custom_call.1} parent=1 // pred_region
      _
    $region9: #{tpu_custom_call.1} parent=1 // pred_fallthru
      _
    // Predicated region
    $region10: #{tpu_custom_call.1} parent=1 // pred_check
      _
    $region11: #{tpu_custom_call.1} parent=1 // pred_check_branch
      %27 = sbr.rel (0) target = $region13
    $region12: #{tpu_custom_call.1} parent=1 // pred_region
      _
    $region13: #{tpu_custom_call.1} parent=1 // pred_fallthru
      _
    // Predicated region
    $region14: #{tpu_custom_call.1} parent=1 // pred_check
      _
    $region15: #{tpu_custom_call.1} parent=1 // pred_check_branch
      %29 = sbr.rel (0) target = $region17
    $region16: #{tpu_custom_call.1} parent=1 // pred_region
      _
    $region17: #{tpu_custom_call.1} parent=1 // pred_fallthru
      _
    // Predicated region
    $region18: #{tpu_custom_call.1} parent=1 // pred_check
      _
    $region19: #{tpu_custom_call.1} parent=1 // pred_check_branch
      %31 = sbr.rel (0) target = $region21
    $region20: #{tpu_custom_call.1} parent=1 // pred_region
      _
    $region21: #{tpu_custom_call.1} parent=1 // pred_fallthru
      _
    // Predicated region
    $region22: #{tpu_custom_call.1} parent=1 // pred_check
      _
    $region23: #{tpu_custom_call.1} parent=1 // pred_check_branch
      %33 = sbr.rel (0) target = $region25
    $region24: #{tpu_custom_call.1} parent=1 // pred_region
      %34 = dma.done [#allocation3], 7168
    $region25: #{tpu_custom_call.1} parent=1 // pred_fallthru
      _
    %v36 = vld [vmem:[%s1] sm:$0xf]
    %v37 = vld [vmem:[#allocation2] sm:$0xff]
    %v38 = vld [vmem:[#allocation2 + $0x8] sm:$0xff]
    %v39 = vld [vmem:[#allocation2 + $0x10] sm:$0xff]
    %v40 = vld [vmem:[#allocation2 + $0x18] sm:$0xff]
    %v41 = vld [vmem:[#allocation2 + $0x20] sm:$0xff]
    %v42 = vld [vmem:[#allocation2 + $0x28] sm:$0xff]
    %v43 = vld [vmem:[#allocation2 + $0x30] sm:$0xff]
    %v44 = vld [vmem:[#allocation2 + $0x38] sm:$0xff]
    %v45 = vld [vmem:[#allocation2 + $0x40] sm:$0xff]
    %v46 = vld [vmem:[#allocation2 + $0x48] sm:$0xff]
    %v47 = vld [vmem:[#allocation2 + $0x50] sm:$0xff]
    %v48 = vld [vmem:[#allocation2 + $0x58] sm:$0xff]
    %v49 = vld [vmem:[#allocation2 + $0x60] sm:$0xff]
    %v50 = vld [vmem:[#allocation2 + $0x68] sm:$0xff]
    %v51 = vld [vmem:[#allocation2 + $0x70] sm:$0xff]
    %v52 = vld [vmem:[#allocation2 + $0x78] sm:$0xff]
    %v53 = vld [vmem:[#allocation2 + $0x80] sm:$0xff]
    %v54 = vld [vmem:[#allocation2 + $0x88] sm:$0xff]
    %v55 = vld [vmem:[#allocation2 + $0x90] sm:$0xff]
    %v56 = vld [vmem:[#allocation2 + $0x98] sm:$0xff]
    %v57 = vld [vmem:[#allocation2 + $0xa0] sm:$0xff]
    %v58 = vld [vmem:[#allocation2 + $0xa8] sm:$0xff]
    %v59 = vld [vmem:[#allocation2 + $0xb0] sm:$0xff]
    %v60 = vld [vmem:[#allocation2 + $0xb8] sm:$0xff]
    %v61 = vld [vmem:[#allocation2 + $0xc0] sm:$0xff]
    %v62 = vld [vmem:[#allocation2 + $0xc8] sm:$0xff]
    %v63 = vld [vmem:[#allocation2 + $0xd0] sm:$0xff]
    %v64 = vld [vmem:[#allocation2 + $0xd8] sm:$0xff]
    %v65 = vld [vmem:[#allocation2 + $0xe0] sm:$0xff]
    %v66 = vld [vmem:[#allocation2 + $0xe8] sm:$0xff]
    %v67 = vld [vmem:[#allocation2 + $0xf0] sm:$0xff]
    %v68 = vld [vmem:[#allocation2 + $0xf8] sm:$0xff]
    %v69 = vld [vmem:[#allocation2 + $0x100] sm:$0xff]
    %v70 = vld [vmem:[#allocation2 + $0x108] sm:$0xff]
    %v71 = vld [vmem:[#allocation2 + $0x110] sm:$0xff]
    %v72 = vld [vmem:[#allocation2 + $0x118] sm:$0xff]
    %v73 = vld [vmem:[#allocation2 + $0x120] sm:$0xff]
    %v74 = vld [vmem:[#allocation2 + $0x128] sm:$0xff]
    %v75 = vld [vmem:[#allocation2 + $0x130] sm:$0xff]
    %v76 = vld [vmem:[#allocation2 + $0x138] sm:$0xff]
    %v77 = vld [vmem:[#allocation2 + $0x140] sm:$0xff]
    %v78 = vld [vmem:[#allocation2 + $0x148] sm:$0xff]
    %v79 = vld [vmem:[#allocation2 + $0x150] sm:$0xff]
    %v80 = vld [vmem:[#allocation2 + $0x158] sm:$0xff]
    %v81 = vld [vmem:[#allocation2 + $0x160] sm:$0xff]
    %v82 = vld [vmem:[#allocation2 + $0x168] sm:$0xff]
    %v83 = vld [vmem:[#allocation2 + $0x170] sm:$0xff]
    %v84 = vld [vmem:[#allocation2 + $0x178] sm:$0xff]
    %v85 = vld [vmem:[#allocation2 + $0x180] sm:$0xff]
    %v86 = vld [vmem:[#allocation2 + $0x188] sm:$0xff]
    %v87 = vld [vmem:[#allocation2 + $0x190] sm:$0xff]
    %v88 = vld [vmem:[#allocation2 + $0x198] sm:$0xff]
    %v89 = vld [vmem:[#allocation2 + $0x1a0] sm:$0xff]
    %v90 = vld [vmem:[#allocation2 + $0x1a8] sm:$0xff]
    %v91 = vld [vmem:[#allocation2 + $0x1b0] sm:$0xff]
    %v92 = vld [vmem:[#allocation2 + $0x1b8] sm:$0xff]
    %v93 = vld [vmem:[%s2] sm:$0xff]
    %95 = vset.pattern.permute.xlu0 0
    %96 = vperm.xlu0 %95, %v93
    %v97 = vpop.permute.xlu0 %96
    %v155 = vunpack.c.l.b16 %v37
    %v156 = vunpack.c.h.b16 %v37
    %v157 = vunpack.c.l.b16 %v38
    %v158 = vunpack.c.h.b16 %v38
    %v159 = vunpack.c.l.b16 %v39
    %v160 = vunpack.c.h.b16 %v39
    %v161 = vunpack.c.l.b16 %v40
    %v162 = vunpack.c.h.b16 %v40
    %v163 = vunpack.c.l.b16 %v41
    %v164 = vunpack.c.h.b16 %v41
    %v165 = vunpack.c.l.b16 %v42
    %v166 = vunpack.c.h.b16 %v42
    %v167 = vunpack.c.l.b16 %v43
    %v168 = vunpack.c.h.b16 %v43
    %v169 = vunpack.c.l.b16 %v44
    %v170 = vunpack.c.h.b16 %v44
    %v171 = vunpack.c.l.b16 %v45
    %v172 = vunpack.c.h.b16 %v45
    %v173 = vunpack.c.l.b16 %v46
    %v174 = vunpack.c.h.b16 %v46
    %v175 = vunpack.c.l.b16 %v47
    %v176 = vunpack.c.h.b16 %v47
    %v177 = vunpack.c.l.b16 %v48
    %v178 = vunpack.c.h.b16 %v48
    %v179 = vunpack.c.l.b16 %v49
    %v180 = vunpack.c.h.b16 %v49
    %v181 = vunpack.c.l.b16 %v50
    %v182 = vunpack.c.h.b16 %v50
    %v183 = vunpack.c.l.b16 %v51
    %v184 = vunpack.c.h.b16 %v51
    %v185 = vunpack.c.l.b16 %v52
    %v186 = vunpack.c.h.b16 %v52
    %v187 = vunpack.c.l.b16 %v53
    %v188 = vunpack.c.h.b16 %v53
    %v189 = vunpack.c.l.b16 %v54
    %v190 = vunpack.c.h.b16 %v54
    %v191 = vunpack.c.l.b16 %v55
    %v192 = vunpack.c.h.b16 %v55
    %v193 = vunpack.c.l.b16 %v56
    %v194 = vunpack.c.h.b16 %v56
    %v195 = vunpack.c.l.b16 %v57
    %v196 = vunpack.c.h.b16 %v57
    %v197 = vunpack.c.l.b16 %v58
    %v198 = vunpack.c.h.b16 %v58
    %v199 = vunpack.c.l.b16 %v59
    %v200 = vunpack.c.h.b16 %v59
    %v201 = vunpack.c.l.b16 %v60
    %v202 = vunpack.c.h.b16 %v60
    %v203 = vunpack.c.l.b16 %v61
    %v204 = vunpack.c.h.b16 %v61
    %v205 = vunpack.c.l.b16 %v62
    %v206 = vunpack.c.h.b16 %v62
    %v207 = vunpack.c.l.b16 %v63
    %v208 = vunpack.c.h.b16 %v63
    %v209 = vunpack.c.l.b16 %v64
    %v210 = vunpack.c.h.b16 %v64
    %v211 = vunpack.c.l.b16 %v65
    %v212 = vunpack.c.h.b16 %v65
    %v213 = vunpack.c.l.b16 %v66
    %v214 = vunpack.c.h.b16 %v66
    %v215 = vunpack.c.l.b16 %v67
    %v216 = vunpack.c.h.b16 %v67
    %v217 = vunpack.c.l.b16 %v68
    %v218 = vunpack.c.h.b16 %v68
    %v219 = vunpack.c.l.b16 %v69
    %v220 = vunpack.c.h.b16 %v69
    %v221 = vunpack.c.l.b16 %v70
    %v222 = vunpack.c.h.b16 %v70
    %v223 = vunpack.c.l.b16 %v71
    %v224 = vunpack.c.h.b16 %v71
    %v225 = vunpack.c.l.b16 %v72
    %v226 = vunpack.c.h.b16 %v72
    %v227 = vunpack.c.l.b16 %v73
    %v228 = vunpack.c.h.b16 %v73
    %v229 = vunpack.c.l.b16 %v74
    %v230 = vunpack.c.h.b16 %v74
    %v231 = vunpack.c.l.b16 %v75
    %v232 = vunpack.c.h.b16 %v75
    %v233 = vunpack.c.l.b16 %v76
    %v234 = vunpack.c.h.b16 %v76
    %v235 = vunpack.c.l.b16 %v77
    %v236 = vunpack.c.h.b16 %v77
    %v237 = vunpack.c.l.b16 %v78
    %v238 = vunpack.c.h.b16 %v78
    %v239 = vunpack.c.l.b16 %v79
    %v240 = vunpack.c.h.b16 %v79
    %v241 = vunpack.c.l.b16 %v80
    %v242 = vunpack.c.h.b16 %v80
    %v243 = vunpack.c.l.b16 %v81
    %v244 = vunpack.c.h.b16 %v81
    %v245 = vunpack.c.l.b16 %v82
    %v246 = vunpack.c.h.b16 %v82
    %v247 = vunpack.c.l.b16 %v83
    %v248 = vunpack.c.h.b16 %v83
    %v249 = vunpack.c.l.b16 %v84
    %v250 = vunpack.c.h.b16 %v84
    %v251 = vunpack.c.l.b16 %v85
    %v252 = vunpack.c.h.b16 %v85
    %v253 = vunpack.c.l.b16 %v86
    %v254 = vunpack.c.h.b16 %v86
    %v255 = vunpack.c.l.b16 %v87
    %v256 = vunpack.c.h.b16 %v87
    %v257 = vunpack.c.l.b16 %v88
    %v258 = vunpack.c.h.b16 %v88
    %v259 = vunpack.c.l.b16 %v89
    %v260 = vunpack.c.h.b16 %v89
    %v261 = vunpack.c.l.b16 %v90
    %v262 = vunpack.c.h.b16 %v90
    %v263 = vunpack.c.l.b16 %v91
    %v264 = vunpack.c.h.b16 %v91
    %v265 = vunpack.c.l.b16 %v92
    %v266 = vunpack.c.h.b16 %v92
    %v267 = vpack.c.b16 %v163, %v155
    %v268 = vpack.c.b16 %v164, %v156
    %v269 = vpack.c.b16 %v165, %v157
    %v270 = vpack.c.b16 %v166, %v158
    %v271 = vpack.c.b16 %v167, %v159
    %v272 = vpack.c.b16 %v168, %v160
    %v273 = vpack.c.b16 %v169, %v161
    %v274 = vpack.c.b16 %v170, %v162
    %v275 = vpack.c.b16 %v179, %v171
    %v276 = vpack.c.b16 %v180, %v172
    %v277 = vpack.c.b16 %v181, %v173
    %v278 = vpack.c.b16 %v182, %v174
    %v279 = vpack.c.b16 %v183, %v175
    %v280 = vpack.c.b16 %v184, %v176
    %v281 = vpack.c.b16 %v185, %v177
    %v282 = vpack.c.b16 %v186, %v178
    %v283 = vpack.c.b16 %v195, %v187
    %v284 = vpack.c.b16 %v196, %v188
    %v285 = vpack.c.b16 %v197, %v189
    %v286 = vpack.c.b16 %v198, %v190
    %v287 = vpack.c.b16 %v199, %v191
    %v288 = vpack.c.b16 %v200, %v192
    %v289 = vpack.c.b16 %v201, %v193
    %v290 = vpack.c.b16 %v202, %v194
    %v291 = vpack.c.b16 %v211, %v203
    %v292 = vpack.c.b16 %v212, %v204
    %v293 = vpack.c.b16 %v213, %v205
    %v294 = vpack.c.b16 %v214, %v206
    %v295 = vpack.c.b16 %v215, %v207
    %v296 = vpack.c.b16 %v216, %v208
    %v297 = vpack.c.b16 %v217, %v209
    %v298 = vpack.c.b16 %v218, %v210
    %v299 = vpack.c.b16 %v227, %v219
    %v300 = vpack.c.b16 %v228, %v220
    %v301 = vpack.c.b16 %v229, %v221
    %v302 = vpack.c.b16 %v230, %v222
    %v303 = vpack.c.b16 %v231, %v223
    %v304 = vpack.c.b16 %v232, %v224
    %v305 = vpack.c.b16 %v233, %v225
    %v306 = vpack.c.b16 %v234, %v226
    %v307 = vpack.c.b16 %v243, %v235
    %v308 = vpack.c.b16 %v244, %v236
    %v309 = vpack.c.b16 %v245, %v237
    %v310 = vpack.c.b16 %v246, %v238
    %v311 = vpack.c.b16 %v247, %v239
    %v312 = vpack.c.b16 %v248, %v240
    %v313 = vpack.c.b16 %v249, %v241
    %v314 = vpack.c.b16 %v250, %v242
    %v315 = vpack.c.b16 %v259, %v251
    %v316 = vpack.c.b16 %v260, %v252
    %v317 = vpack.c.b16 %v261, %v253
    %v318 = vpack.c.b16 %v262, %v254
    %v319 = vpack.c.b16 %v263, %v255
    %v320 = vpack.c.b16 %v264, %v256
    %v321 = vpack.c.b16 %v265, %v257
    %v322 = vpack.c.b16 %v266, %v258
    %vm379 = vcmask 916480
    %v381 = vsel %vm379, %v36, 0
    %383 = vmatprep.subr.bf16.mxu0 %v268
    %384 = vmatpush1.bf16.msra.mxu0 %v267
    %385 = vmatprep.subr.bf16.mxu0 %v276
    %386 = vmatpush1.bf16.msra.mxu0 %v275
    %387 = vmatprep.subr.bf16.mxu0 %v284
    %388 = vmatpush1.bf16.msra.mxu0 %v283
    %389 = vmatprep.subr.bf16.mxu0 %v292
    %390 = vmatpush1.bf16.msra.mxu0 %v291
    %391 = vmatprep.subr.bf16.mxu0 %v300
    %392 = vmatpush1.bf16.msra.mxu0 %v299
    %393 = vmatprep.subr.bf16.mxu0 %v308
    %394 = vmatpush1.bf16.msra.mxu0 %v307
    %395 = vmatprep.subr.bf16.mxu0 %v316
    %396 = vmatpush1.bf16.msra.mxu0 %v315
    %397 = vmatprep.subr.bf16.mxu0 0
    %398 = vmatpush1.bf16.msra.mxu0 0
    %399 = vmatprep.subr.bf16.mxu0 0
    %400 = vmatpush1.bf16.msra.mxu0 0
    %401 = vmatprep.subr.bf16.mxu0 0
    %402 = vmatpush1.bf16.msra.mxu0 0
    %403 = vmatprep.subr.bf16.mxu0 0
    %404 = vmatpush1.bf16.msra.mxu0 0
    %405 = vmatprep.subr.bf16.mxu0 0
    %406 = vmatpush1.bf16.msra.mxu0 0
    %407 = vmatprep.subr.bf16.mxu0 0
    %408 = vmatpush1.bf16.msra.mxu0 0
    %409 = vmatprep.subr.bf16.mxu0 0
    %410 = vmatpush1.bf16.msra.mxu0 0
    %411 = vmatprep.subr.bf16.mxu0 0
    %412 = vmatpush1.bf16.msra.mxu0 0
    %413 = vmatprep.subr.bf16.mxu0 0
    %414 = vmatpush1.bf16.msra.mxu0 0
    %415 = vmatprep.mubr.bf16.mxu0 0
    %416 = vmatmul.mubr.bf16.gmra.mrb[0].mxu0 %v381
    %v417 = vpop.f32.mrb[0].mxu0
    %v418 = vadd.f32 %v97, %v417
    %v419 = vpop.f32.mrb[0].mxu0
    %v420 = vadd.f32 %v97, %v419
    %v421 = vpop.f32.mrb[0].mxu0
    %v422 = vpop.f32.mrb[0].mxu0
    %423 = vdwg.mxu0
    %424 = vmatprep.subr.bf16.mxu0 %v270
    %425 = vmatpush1.bf16.msra.mxu0 %v269
    %426 = vmatprep.subr.bf16.mxu0 %v278
    %427 = vmatpush1.bf16.msra.mxu0 %v277
    %428 = vmatprep.subr.bf16.mxu0 %v286
    %429 = vmatpush1.bf16.msra.mxu0 %v285
    %430 = vmatprep.subr.bf16.mxu0 %v294
    %431 = vmatpush1.bf16.msra.mxu0 %v293
    %432 = vmatprep.subr.bf16.mxu0 %v302
    %433 = vmatpush1.bf16.msra.mxu0 %v301
    %434 = vmatprep.subr.bf16.mxu0 %v310
    %435 = vmatpush1.bf16.msra.mxu0 %v309
    %436 = vmatprep.subr.bf16.mxu0 %v318
    %437 = vmatpush1.bf16.msra.mxu0 %v317
    %438 = vmatprep.subr.bf16.mxu0 0
    %439 = vmatpush1.bf16.msra.mxu0 0
    %440 = vmatprep.subr.bf16.mxu0 0
    %441 = vmatpush1.bf16.msra.mxu0 0
    %442 = vmatprep.subr.bf16.mxu0 0
    %443 = vmatpush1.bf16.msra.mxu0 0
    %444 = vmatprep.subr.bf16.mxu0 0
    %445 = vmatpush1.bf16.msra.mxu0 0
    %446 = vmatprep.subr.bf16.mxu0 0
    %447 = vmatpush1.bf16.msra.mxu0 0
    %448 = vmatprep.subr.bf16.mxu0 0
    %449 = vmatpush1.bf16.msra.mxu0 0
    %450 = vmatprep.subr.bf16.mxu0 0
    %451 = vmatpush1.bf16.msra.mxu0 0
    %452 = vmatprep.subr.bf16.mxu0 0
    %453 = vmatpush1.bf16.msra.mxu0 0
    %454 = vmatprep.subr.bf16.mxu0 0
    %455 = vmatpush1.bf16.msra.mxu0 0
    %456 = vmatprep.mubr.bf16.mxu0 0
    %457 = vmatmul.mubr.bf16.gmra.mrb[0].mxu0 %v381
    %v458 = vpop.f32.mrb[0].mxu0
    %v459 = vadd.f32 %v97, %v458
    %v460 = vpop.f32.mrb[0].mxu0
    %v461 = vadd.f32 %v97, %v460
    %v462 = vpop.f32.mrb[0].mxu0
    %v463 = vpop.f32.mrb[0].mxu0
    %464 = vdwg.mxu0
    %465 = vmatprep.subr.bf16.mxu0 %v272
    %466 = vmatpush1.bf16.msra.mxu0 %v271
    %467 = vmatprep.subr.bf16.mxu0 %v280
    %468 = vmatpush1.bf16.msra.mxu0 %v279
    %469 = vmatprep.subr.bf16.mxu0 %v288
    %470 = vmatpush1.bf16.msra.mxu0 %v287
    %471 = vmatprep.subr.bf16.mxu0 %v296
    %472 = vmatpush1.bf16.msra.mxu0 %v295
    %473 = vmatprep.subr.bf16.mxu0 %v304
    %474 = vmatpush1.bf16.msra.mxu0 %v303
    %475 = vmatprep.subr.bf16.mxu0 %v312
    %476 = vmatpush1.bf16.msra.mxu0 %v311
    %477 = vmatprep.subr.bf16.mxu0 %v320
    %478 = vmatpush1.bf16.msra.mxu0 %v319
    %479 = vmatprep.subr.bf16.mxu0 0
    %480 = vmatpush1.bf16.msra.mxu0 0
    %481 = vmatprep.subr.bf16.mxu0 0
    %482 = vmatpush1.bf16.msra.mxu0 0
    %483 = vmatprep.subr.bf16.mxu0 0
    %484 = vmatpush1.bf16.msra.mxu0 0
    %485 = vmatprep.subr.bf16.mxu0 0
    %486 = vmatpush1.bf16.msra.mxu0 0
    %487 = vmatprep.subr.bf16.mxu0 0
    %488 = vmatpush1.bf16.msra.mxu0 0
    %489 = vmatprep.subr.bf16.mxu0 0
    %490 = vmatpush1.bf16.msra.mxu0 0
    %491 = vmatprep.subr.bf16.mxu0 0
    %492 = vmatpush1.bf16.msra.mxu0 0
    %493 = vmatprep.subr.bf16.mxu0 0
    %494 = vmatpush1.bf16.msra.mxu0 0
    %495 = vmatprep.subr.bf16.mxu0 0
    %496 = vmatpush1.bf16.msra.mxu0 0
    %497 = vmatprep.mubr.bf16.mxu0 0
    %498 = vmatmul.mubr.bf16.gmra.mrb[0].mxu0 %v381
    %v499 = vpop.f32.mrb[0].mxu0
    %v500 = vadd.f32 %v97, %v499
    %v501 = vpop.f32.mrb[0].mxu0
    %v502 = vadd.f32 %v97, %v501
    %v503 = vpop.f32.mrb[0].mxu0
    %v504 = vpop.f32.mrb[0].mxu0
    %505 = vdwg.mxu0
    %506 = vmatprep.subr.bf16.mxu0 %v274
    %507 = vmatpush1.bf16.msra.mxu0 %v273
    %508 = vmatprep.subr.bf16.mxu0 %v282
    %509 = vmatpush1.bf16.msra.mxu0 %v281
    %510 = vmatprep.subr.bf16.mxu0 %v290
    %511 = vmatpush1.bf16.msra.mxu0 %v289
    %512 = vmatprep.subr.bf16.mxu0 %v298
    %513 = vmatpush1.bf16.msra.mxu0 %v297
    %514 = vmatprep.subr.bf16.mxu0 %v306
    %515 = vmatpush1.bf16.msra.mxu0 %v305
    %516 = vmatprep.subr.bf16.mxu0 %v314
    %517 = vmatpush1.bf16.msra.mxu0 %v313
    %518 = vmatprep.subr.bf16.mxu0 %v322
    %519 = vmatpush1.bf16.msra.mxu0 %v321
    %520 = vmatprep.subr.bf16.mxu0 0
    %521 = vmatpush1.bf16.msra.mxu0 0
    %522 = vmatprep.subr.bf16.mxu0 0
    %523 = vmatpush1.bf16.msra.mxu0 0
    %524 = vmatprep.subr.bf16.mxu0 0
    %525 = vmatpush1.bf16.msra.mxu0 0
    %526 = vmatprep.subr.bf16.mxu0 0
    %527 = vmatpush1.bf16.msra.mxu0 0
    %528 = vmatprep.subr.bf16.mxu0 0
    %529 = vmatpush1.bf16.msra.mxu0 0
    %530 = vmatprep.subr.bf16.mxu0 0
    %531 = vmatpush1.bf16.msra.mxu0 0
    %532 = vmatprep.subr.bf16.mxu0 0
    %533 = vmatpush1.bf16.msra.mxu0 0
    %534 = vmatprep.subr.bf16.mxu0 0
    %535 = vmatpush1.bf16.msra.mxu0 0
    %536 = vmatprep.subr.bf16.mxu0 0
    %537 = vmatpush1.bf16.msra.mxu0 0
    %538 = vmatprep.mubr.bf16.mxu0 0
    %539 = vmatmul.mubr.bf16.gmra.mrb[0].mxu0 %v381
    %v540 = vpop.f32.mrb[0].mxu0
    %v541 = vadd.f32 %v97, %v540
    %v542 = vpop.f32.mrb[0].mxu0
    %v543 = vadd.f32 %v97, %v542
    %v544 = vpop.f32.mrb[0].mxu0
    %v545 = vpop.f32.mrb[0].mxu0
    %546 = vdwg.mxu0
    %v547 = vadd.f32 %v418, %v420
    %v548 = vadd.f32 %v547, %v459
    %v549 = vadd.f32 %v548, %v461
    %v550 = vadd.f32 %v549, %v500
    %v551 = vadd.f32 %v550, %v502
    %v552 = vadd.f32 %v551, %v541
    %v553 = vadd.f32 %v552, %v543
    %554 = vadd.xlane.f32.xlu0 %v553
    %v555 = vpop.xlane.xlu0 %554
    %v556 = vmul.f32 %v418, %v418
    %v557 = vmul.f32 %v420, %v420
    %v558 = vmul.f32 %v459, %v459
    %v559 = vmul.f32 %v461, %v461
    %v560 = vmul.f32 %v500, %v500
    %v561 = vmul.f32 %v502, %v502
    %v562 = vmul.f32 %v541, %v541
    %v563 = vmul.f32 %v543, %v543
    %v564 = vadd.f32 %v556, %v557
    %v565 = vadd.f32 %v564, %v558
    %v566 = vadd.f32 %v565, %v559
    %v567 = vadd.f32 %v566, %v560
    %v568 = vadd.f32 %v567, %v561
    %v569 = vadd.f32 %v568, %v562
    %v570 = vadd.f32 %v569, %v563
    %571 = vadd.xlane.f32.xlu0 %v570
    %v572 = vpop.xlane.xlu0 %571
    %v573 = vmul.f32 %v555, 0.0009765625
    %v574 = vmul.f32 %v572, 0.0009765625
    %v575 = vmul.f32 %v573, %v573
    %v576 = vsub.f32 %v574, %v575
    %v577 = vmax.f32 %v576, 0.0
    %v578 = vadd.f32 %v577, 1e-05
    %v579 = vrsqrt.pop %v578
    %v580 = vld [vmem:[%s3] sm:$0xff]
    %v581 = vmul.f32 %v579, %v580
    %v582 = vsub.f32 %v418, %v573
    %v583 = vsub.f32 %v420, %v573
    %v584 = vsub.f32 %v459, %v573
    %v585 = vsub.f32 %v461, %v573
    %v586 = vsub.f32 %v500, %v573
    %v587 = vsub.f32 %v502, %v573
    %v588 = vsub.f32 %v541, %v573
    %v589 = vsub.f32 %v543, %v573
    %591 = vset.pattern.permute.xlu0 0
    %592 = vperm.xlu0 %591, %v581
    %v593 = vpop.permute.xlu0 %592
    %v595 = vmul.f32 %v582, %v593
    %v596 = vmul.f32 %v583, %v593
    %v597 = vmul.f32 %v584, %v593
    %v598 = vmul.f32 %v585, %v593
    %v599 = vmul.f32 %v586, %v593
    %v600 = vmul.f32 %v587, %v593
    %v601 = vmul.f32 %v588, %v593
    %v602 = vmul.f32 %v589, %v593
    %v603 = vld [vmem:[%s4] sm:$0xff]
    %605 = vset.pattern.permute.xlu0 0
    %606 = vperm.xlu0 %605, %v603
    %v607 = vpop.permute.xlu0 %606
    %v609 = vadd.f32 %v595, %v607
    %v610 = vadd.f32 %v596, %v607
    %v611 = vadd.f32 %v597, %v607
    %v612 = vadd.f32 %v598, %v607
    %v613 = vadd.f32 %v599, %v607
    %v614 = vadd.f32 %v600, %v607
    %v615 = vadd.f32 %v601, %v607
    %v616 = vadd.f32 %v602, %v607
    %vm617 = vcmp.gt.f32.partialorder %v609, 0.0
    %vm618 = vcmp.gt.f32.partialorder %v610, 0.0
    %vm619 = vcmp.gt.f32.partialorder %v611, 0.0
    %vm620 = vcmp.gt.f32.partialorder %v612, 0.0
    %vm621 = vcmp.gt.f32.partialorder %v613, 0.0
    %vm622 = vcmp.gt.f32.partialorder %v614, 0.0
    %vm623 = vcmp.gt.f32.partialorder %v615, 0.0
    %vm624 = vcmp.gt.f32.partialorder %v616, 0.0
    %v625 = vmul.f32 %v609, 0.01
    %v626 = vmul.f32 %v610, 0.01
    %v627 = vmul.f32 %v611, 0.01
    %v628 = vmul.f32 %v612, 0.01
    %v629 = vmul.f32 %v613, 0.01
    %v630 = vmul.f32 %v614, 0.01
    %v631 = vmul.f32 %v615, 0.01
    %v632 = vmul.f32 %v616, 0.01
    %v633 = vsel %vm617, %v609, %v625
    %v634 = vsel %vm618, %v610, %v626
    %v635 = vsel %vm619, %v611, %v627
    %v636 = vsel %vm620, %v612, %v628
    %v637 = vsel %vm621, %v613, %v629
    %v638 = vsel %vm622, %v614, %v630
    %v639 = vsel %vm623, %v615, %v631
    %v640 = vsel %vm624, %v616, %v632
    %641 = vst [vmem:[#allocation5] sm:$0xff] %v633
    %642 = vst [vmem:[#allocation5 + $0x8] sm:$0xff] %v634
    %643 = vst [vmem:[#allocation5 + $0x10] sm:$0xff] %v635
    %644 = vst [vmem:[#allocation5 + $0x18] sm:$0xff] %v636
    %645 = vst [vmem:[#allocation5 + $0x20] sm:$0xff] %v637
    %646 = vst [vmem:[#allocation5 + $0x28] sm:$0xff] %v638
    %647 = vst [vmem:[#allocation5 + $0x30] sm:$0xff] %v639
    %648 = vst [vmem:[#allocation5 + $0x38] sm:$0xff] %v640
    // Predicated region
    $region26: #{tpu_custom_call.1} parent=1 // pred_check
      _
    $region27: #{tpu_custom_call.1} parent=1 // pred_check_branch
      %650 = sbr.rel (0) target = $region29
    $region28: #{tpu_custom_call.1} parent=1 // pred_region
      %s652 = ssub.s32 1024, 1024
      %653 = vsyncadd [#allocation4], %s652
      %s655 = sshll.u32 [#allocation5], 4
      %s656 = int_to_ptr.vmem [resolvable:$true] %s655
      %658 = dma.vmem_to_hbm [thread:$0]  %s656, 1024, %s5, [#allocation4]
    $region29: #{tpu_custom_call.1} parent=1 // pred_fallthru
      _
    // Predicated region
    $region30: #{tpu_custom_call.1} parent=1 // pred_check
      _
    $region31: #{tpu_custom_call.1} parent=1 // pred_check_branch
      %660 = sbr.rel (0) target = $region33
    $region32: #{tpu_custom_call.1} parent=1 // pred_region
      %661 = dma.done [#allocation4], 1024
    $region33: #{tpu_custom_call.1} parent=1 // pred_fallthru
      _
    %662 = vsyncpa [#allocation3], 1
    %663 = vsyncpa [#allocation4], 1

</llo_original>
